<compile_context>
chip_gen: v5e
topology: v5e:2x2
jax: 0.10.0
libtpu: 0.0.40
codegen_flags: <defaults>
</compile_context>

<pallas_src>
import jax
import jax.numpy as jnp
from jax.experimental import pallas as pl
from jax.experimental.pallas import tpu as pltpu


def _texture_kernel(p_ref, w1_ref, b1_ref, w2_ref, b2_ref, o_ref):
    # p_ref : (C*4, tm)  transposed patch matrix (lanes = patch index)
    # w1_ref: (C, C*4)   Conv2d weight, reshaped
    # b1_ref: (C, 1)     Conv2d bias
    # w2_ref: (C*4, C)   ConvTranspose2d weight, transposed+reshaped
    # b2_ref: (C*4, 1)   ConvTranspose2d bias, tiled over the 2x2 footprint
    # o_ref : (C*4, tm)  transposed output patch matrix
    p = p_ref[...]
    y = jnp.dot(w1_ref[...], p, preferred_element_type=jnp.float32) + b1_ref[...]
    y = jnp.maximum(y, 0.0)  # ReLU
    z = jnp.dot(w2_ref[...], y, preferred_element_type=jnp.float32) + b2_ref[...]
    o_ref[...] = z.astype(o_ref.dtype)


def _pick_tile(M, C4, dtype_bytes=4):
    """Largest lane tile: multiple of 128, <= 2048, <= M, within ~8MiB VMEM budget."""
    LANE = 128
    if M <= LANE:
        return M  # block equal to full array dim is always legal
    budget = 8 * 1024 * 1024                       # in+out, double-buffered => 4 tiles
    tm_budget = max(LANE, budget // (4 * C4 * dtype_bytes))
    tm = min(2048, tm_budget, (M // LANE) * LANE)
    tm = max(LANE, (tm // LANE) * LANE)
    return tm


@jax.jit
def texture_block_processor(x, w1, b1, w2, b2):
    """x: (B, C, H, W) f32.  w1: (C, C, 2, 2), b1: (C,), w2: (C, C, 2, 2), b2: (C,)."""
    B, C, H, W = x.shape
    assert H % 2 == 0 and W % 2 == 0
    Ho, Wo = H // 2, W // 2
    C4 = C * 4
    M = B * Ho * Wo

    # --- glue: transposed patch matrix (C*4, M); row order (c, dh, dw), col order (b, i, j)
    p_t = (
        x.reshape(B, C, Ho, 2, Wo, 2)
        .transpose(1, 3, 5, 0, 2, 4)
        .reshape(C4, M)
    )

    # --- glue: parameters in weight-stationary matmul form (all tiny)
    w1m = w1.reshape(C, C4)                        # (C, C*4): y = w1m @ p_t
    b1m = b1.reshape(C, 1)
    w2m = w2.transpose(1, 2, 3, 0).reshape(C4, C)  # (C*4, C): z = w2m @ y
    b2m = jnp.broadcast_to(b2[:, None, None], (C, 2, 2)).reshape(C4, 1)

    tm = _pick_tile(M, C4)
    grid = (pl.cdiv(M, tm),)

    out_t = pl.pallas_call(
        _texture_kernel,
        out_shape=jax.ShapeDtypeStruct((C4, M), x.dtype),
        grid_spec=pltpu.PrefetchScalarGridSpec(
            num_scalar_prefetch=0,
            grid=grid,
            in_specs=[
                pl.BlockSpec((C4, tm), lambda i: (0, i)),   # streamed patches
                pl.BlockSpec((C, C4), lambda i: (0, 0)),    # resident weights/biases
                pl.BlockSpec((C, 1), lambda i: (0, 0)),
                pl.BlockSpec((C4, C), lambda i: (0, 0)),
                pl.BlockSpec((C4, 1), lambda i: (0, 0)),
            ],
            out_specs=pl.BlockSpec((C4, tm), lambda i: (0, i)),
        ),
        compiler_params=pltpu.CompilerParams(
            dimension_semantics=("parallel",),
            vmem_limit_bytes=32 * 1024 * 1024,
        ),
        cost_estimate=pl.CostEstimate(
            flops=4 * M * C * C4,                               # two matmuls
            transcendentals=0,
            bytes_accessed=2 * M * C4 * 4 + 2 * C4 * C * 4 + (C + C4) * 4,
        ),
    )(p_t, w1m, b1m, w2m, b2m)

    # --- glue: repack (C*4, M) patches back to NCHW
    z = (
        out_t.reshape(C, 2, 2, B, Ho, Wo)
        .transpose(3, 0, 4, 1, 5, 2)
        .reshape(B, C, H, W)
    )
    return z


def _reference(x, w1, b1, w2, b2):
    """Pure-JAX reference following the conv definitions directly."""
    B, C, H, W = x.shape
    Ho, Wo = H // 2, W // 2
    xp = x.reshape(B, C, Ho, 2, Wo, 2)
    # Conv2d(k=2, s=2): y[b,o,i,j] = sum_{c,d,e} x[b,c,2i+d,2j+e] * w1[o,c,d,e] + b1[o]
    y = jnp.einsum("bcidje,ocde->boij", xp, w1) + b1[None, :, None, None]
    y = jnp.maximum(y, 0.0)
    # ConvTranspose2d(k=2, s=2): z[b,o,2i+d,2j+e] = sum_c y[b,c,i,j] * w2[c,o,d,e] + b2[o]
    zp = jnp.einsum("bcij,code->boidje", y, w2) + b2[None, :, None, None, None, None]
    return zp.reshape(B, C, H, W)


if __name__ == "__main__":
    B, C, H, W = 2, 4, 16, 16

    key = jax.random.PRNGKey(0)
    kx, k1, k2, k3, k4 = jax.random.split(key, 5)

    x = jax.random.normal(kx, (B, C, H, W), dtype=jnp.float32)

    # Deterministic parameter init (PyTorch-style uniform(-k, k), k = 1/sqrt(fan_in))
    fan_in = C * 2 * 2
    bound = 1.0 / jnp.sqrt(jnp.float32(fan_in))
    w1 = jax.random.uniform(k1, (C, C, 2, 2), jnp.float32, -bound, bound)   # Conv2d weight (O, I, kH, kW)
    b1 = jax.random.uniform(k2, (C,), jnp.float32, -bound, bound)
    w2 = jax.random.uniform(k3, (C, C, 2, 2), jnp.float32, -bound, bound)   # ConvTranspose2d weight (I, O, kH, kW)
    b2 = jax.random.uniform(k4, (C,), jnp.float32, -bound, bound)

    out = texture_block_processor(x, w1, b1, w2, b2)
    out = jax.block_until_ready(out)

    ref = _reference(x, w1, b1, w2, b2)
    assert out.shape == (B, C, H, W)
    assert jnp.allclose(out, ref, atol=1e-5, rtol=1e-5), "mismatch vs reference"

    print("KERNEL_OK")
</pallas_src>

<mosaic_0001>
module attributes {stable_mosaic.version = 11 : i64} {
  func.func @_texture_kernel(%arg0: i32, %arg1: memref<16x128xf32, #tpu.memory_space<vmem>>, %arg2: memref<4x16xf32, #tpu.memory_space<vmem>>, %arg3: memref<4x1xf32, #tpu.memory_space<vmem>>, %arg4: memref<16x4xf32, #tpu.memory_space<vmem>>, %arg5: memref<16x1xf32, #tpu.memory_space<vmem>>, %arg6: memref<16x128xf32, #tpu.memory_space<vmem>>) attributes {dimension_semantics = [#tpu.dimension_semantics<parallel>], iteration_bounds = array<i64: 1>, scalar_prefetch = 0 : i64, scratch_operands = 0 : i64, tpu.core_type = #tpu.core_type<tc>, window_params = [{transform_indices = @transform_0, window_bounds = array<i64: 16, 128>}, {pipeline_mode = #tpu.pipeline_mode<synchronous>, transform_indices = @transform_1, window_bounds = array<i64: 4, 16>}, {pipeline_mode = #tpu.pipeline_mode<synchronous>, transform_indices = @transform_2, window_bounds = array<i64: 4, 1>}, {pipeline_mode = #tpu.pipeline_mode<synchronous>, transform_indices = @transform_3, window_bounds = array<i64: 16, 4>}, {pipeline_mode = #tpu.pipeline_mode<synchronous>, transform_indices = @transform_4, window_bounds = array<i64: 16, 1>}, {transform_indices = @transform_5, window_bounds = array<i64: 16, 128>}]} {
    %c0 = arith.constant 0 : index
    %c0_0 = arith.constant 0 : index
    %0 = vector.load %arg1[%c0, %c0_0] : memref<16x128xf32, #tpu.memory_space<vmem>>, vector<16x128xf32>
    %c0_1 = arith.constant 0 : index
    %c0_2 = arith.constant 0 : index
    %1 = vector.load %arg2[%c0_1, %c0_2] : memref<4x16xf32, #tpu.memory_space<vmem>>, vector<4x16xf32>
    %cst = arith.constant dense<0.000000e+00> : vector<4x128xf32>
    %2 = tpu.matmul %1, %0, %cst {dimension_numbers = #tpu.dot_dimension_numbers<[1], [0], [0], [1], [0, 0, 1, 1], [], []>} : vector<4x16xf32>, vector<16x128xf32>, vector<4x128xf32> -> vector<4x128xf32>
    %c0_3 = arith.constant 0 : index
    %c0_4 = arith.constant 0 : index
    %3 = vector.load %arg3[%c0_3, %c0_4] : memref<4x1xf32, #tpu.memory_space<vmem>>, vector<4x1xf32>
    %4 = vector.broadcast %3 : vector<4x1xf32> to vector<4x128xf32>
    %5 = arith.addf %2, %4 : vector<4x128xf32>
    %cst_5 = arith.constant 0.000000e+00 : f32
    %6 = vector.broadcast %cst_5 : f32 to vector<4x128xf32>
    %7 = arith.maximumf %5, %6 : vector<4x128xf32>
    %c0_6 = arith.constant 0 : index
    %c0_7 = arith.constant 0 : index
    %8 = vector.load %arg4[%c0_6, %c0_7] : memref<16x4xf32, #tpu.memory_space<vmem>>, vector<16x4xf32>
    %cst_8 = arith.constant dense<0.000000e+00> : vector<16x128xf32>
    %9 = tpu.matmul %8, %7, %cst_8 {dimension_numbers = #tpu.dot_dimension_numbers<[1], [0], [0], [1], [0, 0, 1, 1], [], []>} : vector<16x4xf32>, vector<4x128xf32>, vector<16x128xf32> -> vector<16x128xf32>
    %c0_9 = arith.constant 0 : index
    %c0_10 = arith.constant 0 : index
    %10 = vector.load %arg5[%c0_9, %c0_10] : memref<16x1xf32, #tpu.memory_space<vmem>>, vector<16x1xf32>
    %11 = vector.broadcast %10 : vector<16x1xf32> to vector<16x128xf32>
    %12 = arith.addf %9, %11 : vector<16x128xf32>
    %c0_11 = arith.constant 0 : index
    %c0_12 = arith.constant 0 : index
    %13 = vector.load %arg6[%c0_11, %c0_12] : memref<16x128xf32, #tpu.memory_space<vmem>>, vector<16x128xf32>
    tpu.vector_store %arg6[%c0_11, %c0_12], %12 {strides = array<i32>} : memref<16x128xf32, #tpu.memory_space<vmem>>, vector<16x128xf32>,
    return
  }
  func.func @transform_0(%arg0: i32) -> (i32, i32) {
    %c0_i32 = arith.constant 0 : i32
    %c0_i32_0 = arith.constant 0 : i32
    return %c0_i32, %arg0 : i32, i32
  }
  func.func @transform_1(%arg0: i32) -> (i32, i32) {
    %c0_i32 = arith.constant 0 : i32
    %c0_i32_0 = arith.constant 0 : i32
    %c0_i32_1 = arith.constant 0 : i32
    return %c0_i32, %c0_i32_0 : i32, i32
  }
  func.func @transform_2(%arg0: i32) -> (i32, i32) {
    %c0_i32 = arith.constant 0 : i32
    %c0_i32_0 = arith.constant 0 : i32
    %c0_i32_1 = arith.constant 0 : i32
    return %c0_i32, %c0_i32_0 : i32, i32
  }
  func.func @transform_3(%arg0: i32) -> (i32, i32) {
    %c0_i32 = arith.constant 0 : i32
    %c0_i32_0 = arith.constant 0 : i32
    %c0_i32_1 = arith.constant 0 : i32
    return %c0_i32, %c0_i32_0 : i32, i32
  }
  func.func @transform_4(%arg0: i32) -> (i32, i32) {
    %c0_i32 = arith.constant 0 : i32
    %c0_i32_0 = arith.constant 0 : i32
    %c0_i32_1 = arith.constant 0 : i32
    return %c0_i32, %c0_i32_0 : i32, i32
  }
  func.func @transform_5(%arg0: i32) -> (i32, i32) {
    %c0_i32 = arith.constant 0 : i32
    %c0_i32_0 = arith.constant 0 : i32
    return %c0_i32, %arg0 : i32, i32
  }
}

</mosaic_0001>

<llo_original>
// kernel: texture_block_processor.1
$region0: #{texture_block_processor.1}
  #allocation0 [shape = 'u32[]', space=smem, size = 0x4, offset = 0x4, fixed_abs, tag = 'smem constant byte address 0x4 - core index']
  #allocation1 [shape = 'u32[72,128]{1,0:T(1,128)}', space=vmem, size = 0x9000, scoped, tag = 'internal scratch']
  %s0 = inlined_call_operand.vmem [shape: f32[16,128], index: 0, kind: input, shape index: {}]
  %s1 = inlined_call_operand.vmem [shape: f32[4,16], index: 1, kind: input, shape index: {}]
  %s2 = inlined_call_operand.vmem [shape: f32[4,1], index: 2, kind: input, shape index: {}]
  %s3 = inlined_call_operand.vmem [shape: f32[16,4], index: 3, kind: input, shape index: {}]
  %s4 = inlined_call_operand.vmem [shape: f32[16,1], index: 4, kind: input, shape index: {}]
  %s5 = inlined_call_operand.vmem [shape: f32[16,128], index: 5, kind: output, shape index: {}]
  %s6 = sld [smem:[#allocation0]]
  $region30: #{texture_block_processor.1} parent=0
    _
  %s8 = ssub.s32 1, %s6
  %s9 = scalar_select 0, %s8, %s6
  // Predicated region
  $region2: #{texture_block_processor.1} parent=0 // pred_check
    _
  $region3: #{texture_block_processor.1} parent=0 // pred_check_branch
    %11 = sbr.rel (0) target = $region5
  $region4: #{texture_block_processor.1} parent=0 // pred_region
    _
  $region5: #{texture_block_processor.1} parent=0 // pred_fallthru
    _
  // Predicated region
  $region6: #{texture_block_processor.1} parent=0 // pred_check
    _
  $region7: #{texture_block_processor.1} parent=0 // pred_check_branch
    %13 = sbr.rel (0) target = $region9
  $region8: #{texture_block_processor.1} parent=0 // pred_region
    _
  $region9: #{texture_block_processor.1} parent=0 // pred_fallthru
    _
  // Predicated region
  $region10: #{texture_block_processor.1} parent=0 // pred_check
    _
  $region11: #{texture_block_processor.1} parent=0 // pred_check_branch
    %15 = sbr.rel (0) target = $region13
  $region12: #{texture_block_processor.1} parent=0 // pred_region
    _
  $region13: #{texture_block_processor.1} parent=0 // pred_fallthru
    _
  // Predicated region
  $region14: #{texture_block_processor.1} parent=0 // pred_check
    _
  $region15: #{texture_block_processor.1} parent=0 // pred_check_branch
    %17 = sbr.rel (0) target = $region17
  $region16: #{texture_block_processor.1} parent=0 // pred_region
    _
  $region17: #{texture_block_processor.1} parent=0 // pred_fallthru
    _
  // Predicated region
  $region18: #{texture_block_processor.1} parent=0 // pred_check
    _
  $region19: #{texture_block_processor.1} parent=0 // pred_check_branch
    %19 = sbr.rel (0) target = $region21
  $region20: #{texture_block_processor.1} parent=0 // pred_region
    _
  $region21: #{texture_block_processor.1} parent=0 // pred_fallthru
    _
  %v20 = vld [vmem:[%s0] sm:$0xff]
  %v21 = vld [vmem:[%s0 + $0x8] sm:$0xff]
  %v22 = vld [vmem:[%s1] sm:$0xf]
  %v23 = vld [vmem:[%s2] sm:$0xf]
  %25 = vset.pattern.permute.xlu0 0
  %26 = vperm.xlu0 %25, %v23
  %v27 = vpop.permute.xlu0 %26
  %vm29 = vcmask 130048
  %v31 = vsel %vm29, %v22, 0
  %33 = vmatpush.msra.mxu0 0.0
  %34 = vmatpush.msra.mxu0 0.0
  %35 = vmatpush.msra.mxu0 0.0
  %36 = vmatpush.msra.mxu0 0.0
  %37 = vmatpush.msra.mxu0 0.0
  %38 = vmatpush.msra.mxu0 0.0
  %39 = vmatpush.msra.mxu0 0.0
  %40 = vmatpush.msra.mxu0 0.0
  %41 = vmatpush.msra.mxu0 0.0
  %42 = vmatpush.msra.mxu0 0.0
  %43 = vmatpush.msra.mxu0 0.0
  %44 = vmatpush.msra.mxu0 0.0
  %45 = vmatpush.msra.mxu0 0.0
  %46 = vmatpush.msra.mxu0 0.0
  %47 = vmatpush.msra.mxu0 %v21
  %48 = vmatpush.msra.mxu0 %v20
  %49 = vmatmul.f32.gmra.mxu0 %v31
  %v50 = vpop.f32.mrf.mxu0
  %v51 = vadd.f32 %v27, %v50
  %52 = vdwg.mxu0
  %v53 = vmax.f32 %v51, 0.0
  %v54 = vld [vmem:[%s3] sm:$0xff]
  %v55 = vld [vmem:[%s3 + $0x8] sm:$0xff]
  %v56 = vld [vmem:[%s4] sm:$0xff]
  %v57 = vld [vmem:[%s4 + $0x8] sm:$0xff]
  %59 = vset.pattern.permute.xlu0 0
  %60 = vperm.xlu0 %59, %v56
  %v61 = vpop.permute.xlu0 %60
  %64 = vset.pattern.permute.xlu0 0
  %65 = vperm.xlu0 %64, %v57
  %v66 = vpop.permute.xlu0 %65
  %vm68 = vcmask 31744
  %v70 = vsel %vm68, %v54, 0
  %v73 = vsel %vm68, %v55, 0
  %vm75 = vcmask 1043456
  %v77 = vsel %vm75, %v53, 0
  %79 = vmatpush.msra.mxu0 0.0
  %80 = vmatpush.msra.mxu0 0.0
  %81 = vmatpush.msra.mxu0 0.0
  %82 = vmatpush.msra.mxu0 0.0
  %83 = vmatpush.msra.mxu0 0.0
  %84 = vmatpush.msra.mxu0 0.0
  %85 = vmatpush.msra.mxu0 0.0
  %86 = vmatpush.msra.mxu0 0.0
  %87 = vmatpush.msra.mxu0 0.0
  %88 = vmatpush.msra.mxu0 0.0
  %89 = vmatpush.msra.mxu0 0.0
  %90 = vmatpush.msra.mxu0 0.0
  %91 = vmatpush.msra.mxu0 0.0
  %92 = vmatpush.msra.mxu0 0.0
  %93 = vmatpush.msra.mxu0 0.0
  %94 = vmatpush.msra.mxu0 %v77
  %95 = vmatmul.f32.gmra.mxu0 %v70
  %v96 = vpop.f32.mrf.mxu0
  %v97 = vadd.f32 %v61, %v96
  %98 = vmatmul.f32.gmra.mxu0 %v73
  %v99 = vpop.f32.mrf.mxu0
  %v100 = vadd.f32 %v66, %v99
  %101 = vdwg.mxu0
  %102 = vst [vmem:[%s5] sm:$0xff] %v97
  %103 = vst [vmem:[%s5 + $0x8] sm:$0xff] %v100
  // Predicated region
  $region22: #{texture_block_processor.1} parent=0 // pred_check
    _
  $region23: #{texture_block_processor.1} parent=0 // pred_check_branch
    %105 = sbr.rel (0) target = $region25
  $region24: #{texture_block_processor.1} parent=0 // pred_region
    _
  $region25: #{texture_block_processor.1} parent=0 // pred_fallthru
    _
  // Predicated region
  $region26: #{texture_block_processor.1} parent=0 // pred_check
    _
  $region27: #{texture_block_processor.1} parent=0 // pred_check_branch
    %107 = sbr.rel (0) target = $region29
  $region28: #{texture_block_processor.1} parent=0 // pred_region
    _
  $region29: #{texture_block_processor.1} parent=0 // pred_fallthru
    _

</llo_original>
